<compile_context>
chip_gen: v5e
topology: v5e:2x2
jax: 0.10.0
libtpu: 0.0.40
codegen_flags: <defaults>
</compile_context>

<pallas_src>
import jax
import jax.numpy as jnp
from jax import lax
from jax.experimental import pallas as pl
from jax.experimental.pallas import tpu as pltpu


def skipgram_kernel(c_ref, t_ref, o_ref,        # (TB,1), (TB,1), (TB*K,1) int32 index blocks
                    emb_v_ref, emb_u_ref,       # (V, D) tables, VMEM-resident (not double-buffered)
                    out_ref,                    # (8, 128) per-slice partial-sum output block
                    acc_ref):                   # (1, 1) persistent f32 accumulator (VMEM scratch)
    j = pl.program_id(1)

    @pl.when(j == 0)
    def _init():
        acc_ref[...] = jnp.zeros_like(acc_ref)

    TB = c_ref.shape[0]
    TBK = o_ref.shape[0]
    K = TBK // TB
    V, D = emb_v_ref.shape

    emb_v = emb_v_ref[...]
    emb_u = emb_u_ref[...]

    def onehot_gather(idx_col, rows, table):
        # Vectorized row gather on the MXU: (rows, V) one-hot @ (V, D) table.
        # Out-of-range ids yield an all-zero row (no OOB VMEM access).
        lane_ids = lax.broadcasted_iota(jnp.int32, (rows, V), 1)
        onehot = (idx_col == lane_ids).astype(table.dtype)
        return jnp.dot(onehot, table, preferred_element_type=jnp.float32)

    ce = onehot_gather(c_ref[...], TB, emb_v)    # (TB, D)     center rows
    te = onehot_gather(t_ref[...], TB, emb_u)    # (TB, D)     target rows
    oe = onehot_gather(o_ref[...], TBK, emb_u)   # (TB*K, D)   outer rows (flat, batch-major)

    # Target score: per-row dot product.
    scores = jnp.sum(te * ce, axis=-1, keepdims=True)                  # (TB, 1)

    # All center x outer dot products in one lane-dense MXU matmul, then a
    # block-diagonal segment mask selects each example's own K outer words.
    full = lax.dot_general(ce, oe, (((1,), (1,)), ((), ())),
                           preferred_element_type=jnp.float32)         # (TB, TB*K)
    col = lax.broadcasted_iota(jnp.int32, (TB, TBK), 1)
    row = lax.broadcasted_iota(jnp.int32, (TB, TBK), 0)
    seg = (col >= row * K) & (col < (row + 1) * K)
    masked = jnp.where(seg, full, -jnp.inf)                            # (TB, TB*K)

    # Stabilized per-example logsumexp over its K outer words.
    m = jnp.max(masked, axis=-1, keepdims=True)                        # (TB, 1)
    lse = m + jnp.log(jnp.sum(jnp.exp(masked - m), axis=-1, keepdims=True))

    # Per-example NLL term = lse(norm_scores) - score; accumulate the tile sum.
    acc_ref[...] = acc_ref[...] + jnp.sum(lse - scores, keepdims=True)

    @pl.when(j == pl.num_programs(1) - 1)
    def _finalize():
        out_ref[...] = jnp.broadcast_to(acc_ref[...], out_ref.shape)


def skipgram_forward(center_words, target_words, outer_words, emb_v, emb_u,
                     *, tb=None, num_parallel=2):
    """center_words/target_words: (B,1) int, outer_words: (B,K) int,
    emb_v/emb_u: (V,D) float32. Returns scalar float32 NLL."""
    B, K = outer_words.shape
    V, D = emb_v.shape

    # Leading "parallel" axis: lets v7x's 2 TensorCores split the batch
    # reduction (each produces its own partial block); harmless on 1-TC chips.
    NC = num_parallel if (num_parallel > 0 and B % num_parallel == 0) else 1
    per_core = B // NC
    TB = min(tb if tb is not None else 128, per_core)
    assert TB % 8 == 0, f"batch tile {TB} must be a multiple of 8"
    assert per_core % TB == 0, f"per-slice batch {per_core} not divisible by tile {TB}"
    G = per_core // TB

    c_col = center_words.reshape(B, 1).astype(jnp.int32)
    t_col = target_words.reshape(B, 1).astype(jnp.int32)
    o_col = outer_words.reshape(B * K, 1).astype(jnp.int32)      # batch-major flat

    idx_b_spec = pl.BlockSpec((TB, 1), lambda c, j: (c * G + j, 0))
    idx_bk_spec = pl.BlockSpec((TB * K, 1), lambda c, j: (c * G + j, 0))
    # Whole tables resident in VMEM, loaded once, NOT double-buffered.
    table_spec = pl.BlockSpec(memory_space=pltpu.MemorySpace.VMEM)

    table_bytes = 2 * V * D * jnp.dtype(emb_v.dtype).itemsize
    vmem_limit = int(min(128 * 1024 * 1024, table_bytes + (32 << 20)))

    out = pl.pallas_call(
        skipgram_kernel,
        out_shape=jax.ShapeDtypeStruct((NC * 8, 128), jnp.float32),
        grid_spec=pltpu.PrefetchScalarGridSpec(
            num_scalar_prefetch=0,
            grid=(NC, G),
            in_specs=[idx_b_spec, idx_b_spec, idx_bk_spec, table_spec, table_spec],
            out_specs=pl.BlockSpec((8, 128), lambda c, j: (c, 0)),
            scratch_shapes=[pltpu.VMEM((1, 1), jnp.float32)],
        ),
        compiler_params=pltpu.CompilerParams(
            # Batch is split across slices (parallel) and reduced within a
            # slice (arbitrary) into the resident scratch accumulator.
            dimension_semantics=("parallel", "arbitrary"),
            vmem_limit_bytes=vmem_limit,
        ),
    )(c_col, t_col, o_col, emb_v, emb_u)

    partials = out[0::8, 0]                  # one partial NLL sum per slice / core
    return jnp.sum(partials) / B


def skipgram_reference(center_words, target_words, outer_words, emb_v, emb_u):
    ce = emb_v[center_words[:, 0]]                 # (B, D)
    te = emb_u[target_words[:, 0]]                 # (B, D)
    oe = emb_u[outer_words]                        # (B, K, D)
    scores = jnp.sum(te * ce, axis=1)              # (B,)
    norm = jnp.einsum("bkd,bd->bk", oe, ce)        # (B, K)
    return -jnp.mean(jnp.log(jnp.exp(scores) / jnp.sum(jnp.exp(norm), axis=1)))


if __name__ == "__main__":
    B, K = 64, 8          # batch, number of outer (context/noise) words
    V, D = 128, 32        # vocab_size, projection_dim
    TB = 16               # batch tile per slice -> grid (2, 2): exercises both
                          # the parallel partials and sequential accumulation

    key = jax.random.PRNGKey(0)
    k_v, k_u, k_c, k_t, k_o = jax.random.split(key, 5)

    # embedding_v: uniform(-1, 1) as in the module's __init__.
    emb_v = jax.random.uniform(k_v, (V, D), jnp.float32, minval=-1.0, maxval=1.0)
    # NOTE: the module inits embedding_u to all-zeros; we use a nonzero
    # deterministic init so the softmax/NLL path is numerically non-trivial.
    emb_u = jax.random.uniform(k_u, (V, D), jnp.float32, minval=-0.5, maxval=0.5)

    center_words = jax.random.randint(k_c, (B, 1), 0, V, dtype=jnp.int32)
    target_words = jax.random.randint(k_t, (B, 1), 0, V, dtype=jnp.int32)
    outer_words = jax.random.randint(k_o, (B, K), 0, V, dtype=jnp.int32)

    nll = skipgram_forward(center_words, target_words, outer_words, emb_v, emb_u, tb=TB)
    nll = jax.block_until_ready(nll)

    nll_ref = skipgram_reference(center_words, target_words, outer_words, emb_v, emb_u)
    assert jnp.allclose(nll, nll_ref, rtol=1e-4, atol=1e-5), (nll, nll_ref)

    print("KERNEL_OK")
</pallas_src>

<mosaic_0001>
module attributes {stable_mosaic.version = 11 : i64} {
  func.func @skipgram_kernel(%arg0: i32, %arg1: i32, %arg2: memref<16x1xi32, #tpu.memory_space<vmem>>, %arg3: memref<16x1xi32, #tpu.memory_space<vmem>>, %arg4: memref<128x1xi32, #tpu.memory_space<vmem>>, %arg5: memref<128x32xf32, #tpu.memory_space<vmem>>, %arg6: memref<128x32xf32, #tpu.memory_space<vmem>>, %arg7: memref<8x128xf32, #tpu.memory_space<vmem>>, %arg8: memref<1x1xf32, #tpu.memory_space<vmem>>) attributes {dimension_semantics = [#tpu.dimension_semantics<parallel>, #tpu.dimension_semantics<arbitrary>], iteration_bounds = array<i64: 2, 2>, scalar_prefetch = 0 : i64, scratch_operands = 1 : i64, tpu.core_type = #tpu.core_type<tc>, window_params = [{transform_indices = @transform_0, window_bounds = array<i64: 16, 1>}, {transform_indices = @transform_1, window_bounds = array<i64: 16, 1>}, {transform_indices = @transform_2, window_bounds = array<i64: 128, 1>}, {pipeline_mode = #tpu.pipeline_mode<synchronous>, transform_indices = @transform_3, window_bounds = array<i64: 128, 32>}, {pipeline_mode = #tpu.pipeline_mode<synchronous>, transform_indices = @transform_4, window_bounds = array<i64: 128, 32>}, {transform_indices = @transform_5, window_bounds = array<i64: 8, 128>}]} {
    %c0_i32 = arith.constant 0 : i32
    %0 = arith.cmpi eq, %arg1, %c0_i32 : i32
    %1 = arith.extui %0 : i1 to i32
    %c0_i32_0 = arith.constant 0 : i32
    %2 = arith.cmpi ne, %1, %c0_i32_0 : i32
    scf.if %2 {
      %cst_25 = arith.constant 0.000000e+00 : f32
      %64 = vector.broadcast %cst_25 : f32 to vector<1x1xf32>
      %c0_26 = arith.constant 0 : index
      %c0_27 = arith.constant 0 : index
      %65 = vector.load %arg8[%c0_26, %c0_27] : memref<1x1xf32, #tpu.memory_space<vmem>>, vector<1x1xf32>
      tpu.vector_store %arg8[%c0_26, %c0_27], %64 {strides = array<i32>} : memref<1x1xf32, #tpu.memory_space<vmem>>, vector<1x1xf32>,
    } else {
    }
    %c0 = arith.constant 0 : index
    %c0_1 = arith.constant 0 : index
    %3 = vector.load %arg5[%c0, %c0_1] : memref<128x32xf32, #tpu.memory_space<vmem>>, vector<128x32xf32>
    %c0_2 = arith.constant 0 : index
    %c0_3 = arith.constant 0 : index
    %4 = vector.load %arg6[%c0_2, %c0_3] : memref<128x32xf32, #tpu.memory_space<vmem>>, vector<128x32xf32>
    %c0_4 = arith.constant 0 : index
    %c0_5 = arith.constant 0 : index
    %5 = vector.load %arg2[%c0_4, %c0_5] : memref<16x1xi32, #tpu.memory_space<vmem>>, vector<16x1xi32>
    %6 = tpu.iota {dimensions = array<i32: 1>} : vector<16x128xi32>
    %7 = vector.broadcast %5 : vector<16x1xi32> to vector<16x128xi32>
    %8 = arith.cmpi eq, %7, %6 : vector<16x128xi32>
    %9 = arith.extui %8 : vector<16x128xi1> to vector<16x128xi32>
    %10 = arith.sitofp %9 : vector<16x128xi32> to vector<16x128xf32>
    %cst = arith.constant dense<0.000000e+00> : vector<16x32xf32>
    %11 = tpu.matmul %10, %3, %cst {dimension_numbers = #tpu.dot_dimension_numbers<[1], [0], [0], [1], [0, 0, 1, 1], [], []>} : vector<16x128xf32>, vector<128x32xf32>, vector<16x32xf32> -> vector<16x32xf32>
    %c0_6 = arith.constant 0 : index
    %c0_7 = arith.constant 0 : index
    %12 = vector.load %arg3[%c0_6, %c0_7] : memref<16x1xi32, #tpu.memory_space<vmem>>, vector<16x1xi32>
    %13 = tpu.iota {dimensions = array<i32: 1>} : vector<16x128xi32>
    %14 = vector.broadcast %12 : vector<16x1xi32> to vector<16x128xi32>
    %15 = arith.cmpi eq, %14, %13 : vector<16x128xi32>
    %16 = arith.extui %15 : vector<16x128xi1> to vector<16x128xi32>
    %17 = arith.sitofp %16 : vector<16x128xi32> to vector<16x128xf32>
    %cst_8 = arith.constant dense<0.000000e+00> : vector<16x32xf32>
    %18 = tpu.matmul %17, %4, %cst_8 {dimension_numbers = #tpu.dot_dimension_numbers<[1], [0], [0], [1], [0, 0, 1, 1], [], []>} : vector<16x128xf32>, vector<128x32xf32>, vector<16x32xf32> -> vector<16x32xf32>
    %c0_9 = arith.constant 0 : index
    %c0_10 = arith.constant 0 : index
    %19 = vector.load %arg4[%c0_9, %c0_10] : memref<128x1xi32, #tpu.memory_space<vmem>>, vector<128x1xi32>
    %20 = tpu.iota {dimensions = array<i32: 1>} : vector<128x128xi32>
    %21 = vector.broadcast %19 : vector<128x1xi32> to vector<128x128xi32>
    %22 = arith.cmpi eq, %21, %20 : vector<128x128xi32>
    %23 = arith.extui %22 : vector<128x128xi1> to vector<128x128xi32>
    %24 = arith.sitofp %23 : vector<128x128xi32> to vector<128x128xf32>
    %cst_11 = arith.constant dense<0.000000e+00> : vector<128x32xf32>
    %25 = tpu.matmul %24, %4, %cst_11 {dimension_numbers = #tpu.dot_dimension_numbers<[1], [0], [0], [1], [0, 0, 1, 1], [], []>} : vector<128x128xf32>, vector<128x32xf32>, vector<128x32xf32> -> vector<128x32xf32>
    %26 = arith.mulf %18, %11 : vector<16x32xf32>
    %cst_12 = arith.constant dense<0.000000e+00> : vector<16xf32>
    %27 = vector.multi_reduction <add>, %26, %cst_12 [1] : vector<16x32xf32> to vector<16xf32>
    %28 = vector.shape_cast %27 : vector<16xf32> to vector<16x1xf32>
    %cst_13 = arith.constant dense<0.000000e+00> : vector<16x128xf32>
    %29 = tpu.matmul %11, %25, %cst_13 {dimension_numbers = #tpu.dot_dimension_numbers<[1], [1], [0], [0], [0, 0, 1, 0], [], []>} : vector<16x32xf32>, vector<128x32xf32>, vector<16x128xf32> -> vector<16x128xf32>
    %30 = tpu.iota {dimensions = array<i32: 1>} : vector<16x128xi32>
    %31 = tpu.iota {dimensions = array<i32: 0>} : vector<16x128xi32>
    %c8_i32 = arith.constant 8 : i32
    %32 = vector.broadcast %c8_i32 : i32 to vector<16x128xi32>
    %33 = arith.muli %31, %32 : vector<16x128xi32>
    %34 = arith.cmpi sge, %30, %33 : vector<16x128xi32>
    %c1_i32 = arith.constant 1 : i32
    %35 = vector.broadcast %c1_i32 : i32 to vector<16x128xi32>
    %36 = arith.addi %31, %35 : vector<16x128xi32>
    %c8_i32_14 = arith.constant 8 : i32
    %37 = vector.broadcast %c8_i32_14 : i32 to vector<16x128xi32>
    %38 = arith.muli %36, %37 : vector<16x128xi32>
    %39 = arith.cmpi slt, %30, %38 : vector<16x128xi32>
    %40 = arith.andi %34, %39 : vector<16x128xi1>
    %cst_15 = arith.constant 0xFF800000 : f32
    %41 = vector.broadcast %cst_15 : f32 to vector<16x128xf32>
    %42 = arith.select %40, %29, %41 : vector<16x128xi1>, vector<16x128xf32>
    %cst_16 = arith.constant dense<0xFF800000> : vector<16xf32>
    %43 = vector.multi_reduction <maximumf>, %42, %cst_16 [1] : vector<16x128xf32> to vector<16xf32>
    %44 = vector.shape_cast %43 : vector<16xf32> to vector<16x1xf32>
    %45 = vector.broadcast %44 : vector<16x1xf32> to vector<16x128xf32>
    %46 = arith.subf %42, %45 : vector<16x128xf32>
    %47 = math.exp %46 : vector<16x128xf32>
    %cst_17 = arith.constant dense<0.000000e+00> : vector<16xf32>
    %48 = vector.multi_reduction <add>, %47, %cst_17 [1] : vector<16x128xf32> to vector<16xf32>
    %49 = vector.shape_cast %48 : vector<16xf32> to vector<16x1xf32>
    %50 = math.log %49 : vector<16x1xf32>
    %51 = arith.addf %44, %50 : vector<16x1xf32>
    %c0_18 = arith.constant 0 : index
    %c0_19 = arith.constant 0 : index
    %52 = vector.load %arg8[%c0_18, %c0_19] : memref<1x1xf32, #tpu.memory_space<vmem>>, vector<1x1xf32>
    %53 = arith.subf %51, %28 : vector<16x1xf32>
    %54 = vector.shape_cast %53 : vector<16x1xf32> to vector<1x16x1xf32>
    %cst_20 = arith.constant dense<0.000000e+00> : vector<1xf32>
    %55 = vector.multi_reduction <add>, %54, %cst_20 [1, 2] : vector<1x16x1xf32> to vector<1xf32>
    %56 = vector.shape_cast %55 : vector<1xf32> to vector<1x1x1xf32>
    %57 = vector.extract %56[0, 0, 0] : f32 from vector<1x1x1xf32>
    %58 = vector.broadcast %57 : f32 to vector<1x1xf32>
    %59 = arith.addf %52, %58 : vector<1x1xf32>
    %c0_21 = arith.constant 0 : index
    %c0_22 = arith.constant 0 : index
    %60 = vector.load %arg8[%c0_21, %c0_22] : memref<1x1xf32, #tpu.memory_space<vmem>>, vector<1x1xf32>
    tpu.vector_store %arg8[%c0_21, %c0_22], %59 {strides = array<i32>} : memref<1x1xf32, #tpu.memory_space<vmem>>, vector<1x1xf32>,
    %c1_i32_23 = arith.constant 1 : i32
    %61 = arith.cmpi eq, %arg1, %c1_i32_23 : i32
    %62 = arith.extui %61 : i1 to i32
    %c0_i32_24 = arith.constant 0 : i32
    %63 = arith.cmpi ne, %62, %c0_i32_24 : i32
    scf.if %63 {
      %c0_25 = arith.constant 0 : index
      %c0_26 = arith.constant 0 : index
      %64 = vector.load %arg8[%c0_25, %c0_26] : memref<1x1xf32, #tpu.memory_space<vmem>>, vector<1x1xf32>
      %65 = vector.shape_cast %64 : vector<1x1xf32> to vector<1x1xf32>
      %66 = vector.broadcast %65 : vector<1x1xf32> to vector<8x128xf32>
      %c0_27 = arith.constant 0 : index
      %c0_28 = arith.constant 0 : index
      %67 = vector.load %arg7[%c0_27, %c0_28] : memref<8x128xf32, #tpu.memory_space<vmem>>, vector<8x128xf32>
      tpu.vector_store %arg7[%c0_27, %c0_28], %66 {strides = array<i32>} : memref<8x128xf32, #tpu.memory_space<vmem>>, vector<8x128xf32>,
    } else {
    }
    return
  }
  func.func @transform_0(%arg0: i32, %arg1: i32) -> (i32, i32) {
    %c2_i32 = arith.constant 2 : i32
    %0 = arith.muli %arg0, %c2_i32 : i32
    %1 = arith.addi %0, %arg1 : i32
    %c0_i32 = arith.constant 0 : i32
    %c0_i32_0 = arith.constant 0 : i32
    return %1, %c0_i32 : i32, i32
  }
  func.func @transform_1(%arg0: i32, %arg1: i32) -> (i32, i32) {
    %c2_i32 = arith.constant 2 : i32
    %0 = arith.muli %arg0, %c2_i32 : i32
    %1 = arith.addi %0, %arg1 : i32
    %c0_i32 = arith.constant 0 : i32
    %c0_i32_0 = arith.constant 0 : i32
    return %1, %c0_i32 : i32, i32
  }
  func.func @transform_2(%arg0: i32, %arg1: i32) -> (i32, i32) {
    %c2_i32 = arith.constant 2 : i32
    %0 = arith.muli %arg0, %c2_i32 : i32
    %1 = arith.addi %0, %arg1 : i32
    %c0_i32 = arith.constant 0 : i32
    %c0_i32_0 = arith.constant 0 : i32
    return %1, %c0_i32 : i32, i32
  }
  func.func @transform_3(%arg0: i32, %arg1: i32) -> (i32, i32) {
    %c0_i32 = arith.constant 0 : i32
    %c0_i32_0 = arith.constant 0 : i32
    %c0_i32_1 = arith.constant 0 : i32
    return %c0_i32, %c0_i32_0 : i32, i32
  }
  func.func @transform_4(%arg0: i32, %arg1: i32) -> (i32, i32) {
    %c0_i32 = arith.constant 0 : i32
    %c0_i32_0 = arith.constant 0 : i32
    %c0_i32_1 = arith.constant 0 : i32
    return %c0_i32, %c0_i32_0 : i32, i32
  }
  func.func @transform_5(%arg0: i32, %arg1: i32) -> (i32, i32) {
    %c0_i32 = arith.constant 0 : i32
    %c0_i32_0 = arith.constant 0 : i32
    return %arg0, %c0_i32 : i32, i32
  }
}

</mosaic_0001>

<llo_original>
// kernel: tpu_custom_call.1
$region0: #{tpu_custom_call.1}
  #allocation0 [shape = 'u32[]', space=smem, size = 0x4, offset = 0x4, fixed_abs, tag = 'smem constant byte address 0x4 - core index']
  #allocation1 [shape = 'u32[72,128]{1,0:T(1,128)}', space=vmem, size = 0x9000, scoped, tag = 'internal scratch']
  #allocation2 [shape = 'f32[1,1]{1,0:T(1,128)}', space=vmem, size = 0x200, scoped, tag = 'scratch operand']
  %s0 = inlined_call_operand.vmem [shape: s32[64,1], index: 0, kind: input, shape index: {}]
  %s1 = inlined_call_operand.vmem [shape: s32[64,1], index: 1, kind: input, shape index: {}]
  %s2 = inlined_call_operand.vmem [shape: s32[512,1], index: 2, kind: input, shape index: {}]
  %s3 = inlined_call_operand.vmem [shape: f32[128,32], index: 3, kind: input, shape index: {}]
  %s4 = inlined_call_operand.vmem [shape: f32[128,32], index: 4, kind: input, shape index: {}]
  %s5 = inlined_call_operand.hbm [shape: f32[16,128], index: 5, kind: output, shape index: {}]
  %s6 = sld [smem:[#allocation0]]
  $region61: #{tpu_custom_call.1} parent=0
    _
  %s8 = ssub.s32 1, %s6
  %s9 = scalar_select 0, %s8, %s6
  $region1: #{tpu_custom_call.1} parent=0
    #allocation3 [shape = 'u8[8192]{0}', space=vmem, size = 0x2000, scoped, tag = 'output window, operand 0']
    #allocation4 [shape = 's32[2]{0}', space=sflag, size = 0x8, scoped, tag = 'scoped memory for tpu_custom_call.1']
    %10 = vsyncpa [#allocation4], 0
    %s11 = scalar_lea.sflag [#allocation4], 1
    %12 = vsyncpa %s11, 0
    loop: start=0, step=1, limit=6
    $region2: #{tpu_custom_call.1} parent=1 // loop_pre_header
      _
    $region3: #{tpu_custom_call.1} parent=1 // loop_header
      %s14 = sphi 0, %s18
      %p15 = scmp.ge.s32.totalorder %s14, 6
      %s21 = sphi 0, %s33
      %s22 = sphi 0, %s29
      %s23 = sphi 0, %s21
      %s24 = sphi 0, %s22
      %s25 = sphi 0, %s23
      %s26 = sphi 0, %s24
      %s40 = sphi 0, %s42
      %s43 = sphi 0, %s40
      %s44 = sphi 0, %s43
      %s60 = sphi 0, %s44
      %s70 = sphi 0, %s72
      %s73 = sphi 0, %s70
      %s74 = sphi 0, %s73
      %s90 = sphi 0, %s74
      %s100 = sphi 0, %s102
      %s103 = sphi 0, %s100
      %s104 = sphi 0, %s103
      %s120 = sphi 0, %s104
      %s124 = sphi 0, %s124
      %s126 = sphi 0, %s124
      %s127 = sphi 0, %s126
      %s141 = sphi 0, %s127
      %s145 = sphi 0, %s145
      %s147 = sphi 0, %s145
      %s148 = sphi 0, %s147
      %s162 = sphi 0, %s148
      %s168 = sphi 0, %s170
      %s171 = sphi 0, %s168
      %s172 = sphi 0, %s171
      %s188 = sphi 0, %s172
    $region4: #{tpu_custom_call.1} parent=1 // loop_header_branch
      %17 = sbr.rel (%p15) target = $region8
    $region5: #{tpu_custom_call.1} parent=1 // loop_body
      %s19 = ssub.s32 %s14, 1
      %s20 = ssub.s32 %s14, 2
      %s27 = sadd.s32 1, %s22
      %p28 = scmp.ge.s32.totalorder %s27, 2
      %s29 = scalar_select %p28, 0, %s27
      %s30 = sadd.s32 1, %s21
      %s31 = scalar_select %p28, %s30, %s21
      %p32 = scmp.ge.s32.totalorder %s31, 2
      %s33 = scalar_select %p32, 0, %s31
      %s34 = smul.u32 %s21, 2
      %s35 = sadd.s32 %s34, %s22
      %s36 = smul.u32 %s33, 2
      %s37 = sadd.s32 %s36, %s29
      %s38 = ssub.s32 %s35, %s37
      %p39 = scmp.eq.s32.totalorder %s38, 0
      %s41 = sadd.s32 %s40, 1
      %s42 = scalar_select %p39, %s40, %s41
      %p45 = pneg %p39
      %p46 = scmp.eq.s32.totalorder %s14, 3
      %p47 = por %p45, %p46
      %p48 = scmp.ne.s32.totalorder %s40, %s43
      %p49 = scmp.eq.s32.totalorder %s14, 0
      %p50 = por %p48, %p49
      %p51 = scmp.ne.s32.totalorder %s40, %s43
      %p52 = scmp.eq.s32.totalorder %s19, 3
      %p53 = por %p51, %p52
      %p54 = scmp.ne.s32.totalorder %s43, %s44
      %p55 = scmp.eq.s32.totalorder %s19, 0
      %p56 = por %p54, %p55
      %p57 = scmp.ne.s32.totalorder %s43, %s44
      %p58 = scmp.eq.s32.totalorder %s20, 3
      %p59 = por %p57, %p58
      %p61 = scmp.ne.s32.totalorder %s44, %s60
      %p62 = scmp.eq.s32.totalorder %s20, 0
      %p63 = por %p61, %p62
      %s64 = smul.u32 %s21, 2
      %s65 = sadd.s32 %s64, %s22
      %s66 = smul.u32 %s33, 2
      %s67 = sadd.s32 %s66, %s29
      %s68 = ssub.s32 %s65, %s67
      %p69 = scmp.eq.s32.totalorder %s68, 0
      %s71 = sadd.s32 %s70, 1
      %s72 = scalar_select %p69, %s70, %s71
      %p75 = pneg %p69
      %p76 = scmp.eq.s32.totalorder %s14, 3
      %p77 = por %p75, %p76
      %p78 = scmp.ne.s32.totalorder %s70, %s73
      %p79 = scmp.eq.s32.totalorder %s14, 0
      %p80 = por %p78, %p79
      %p81 = scmp.ne.s32.totalorder %s70, %s73
      %p82 = scmp.eq.s32.totalorder %s19, 3
      %p83 = por %p81, %p82
      %p84 = scmp.ne.s32.totalorder %s73, %s74
      %p85 = scmp.eq.s32.totalorder %s19, 0
      %p86 = por %p84, %p85
      %p87 = scmp.ne.s32.totalorder %s73, %s74
      %p88 = scmp.eq.s32.totalorder %s20, 3
      %p89 = por %p87, %p88
      %p91 = scmp.ne.s32.totalorder %s74, %s90
      %p92 = scmp.eq.s32.totalorder %s20, 0
      %p93 = por %p91, %p92
      %s94 = smul.u32 %s21, 2
      %s95 = sadd.s32 %s94, %s22
      %s96 = smul.u32 %s33, 2
      %s97 = sadd.s32 %s96, %s29
      %s98 = ssub.s32 %s95, %s97
      %p99 = scmp.eq.s32.totalorder %s98, 0
      %s101 = sadd.s32 %s100, 1
      %s102 = scalar_select %p99, %s100, %s101
      %p105 = pneg %p99
      %p106 = scmp.eq.s32.totalorder %s14, 3
      %p107 = por %p105, %p106
      %p108 = scmp.ne.s32.totalorder %s100, %s103
      %p109 = scmp.eq.s32.totalorder %s14, 0
      %p110 = por %p108, %p109
      %p111 = scmp.ne.s32.totalorder %s100, %s103
      %p112 = scmp.eq.s32.totalorder %s19, 3
      %p113 = por %p111, %p112
      %p114 = scmp.ne.s32.totalorder %s103, %s104
      %p115 = scmp.eq.s32.totalorder %s19, 0
      %p116 = por %p114, %p115
      %p117 = scmp.ne.s32.totalorder %s103, %s104
      %p118 = scmp.eq.s32.totalorder %s20, 3
      %p119 = por %p117, %p118
      %p121 = scmp.ne.s32.totalorder %s104, %s120
      %p122 = scmp.eq.s32.totalorder %s20, 0
      %p123 = por %p121, %p122
      %s125 = sadd.s32 %s124, 1
      %p128 = scmp.eq.s32.totalorder %s14, 3
      %p129 = scmp.ne.s32.totalorder %s124, %s126
      %p130 = scmp.eq.s32.totalorder %s14, 0
      %p131 = por %p129, %p130
      %p132 = scmp.ne.s32.totalorder %s124, %s126
      %p133 = scmp.eq.s32.totalorder %s19, 3
      %p134 = por %p132, %p133
      %p135 = scmp.ne.s32.totalorder %s126, %s127
      %p136 = scmp.eq.s32.totalorder %s19, 0
      %p137 = por %p135, %p136
      %p138 = scmp.ne.s32.totalorder %s126, %s127
      %p139 = scmp.eq.s32.totalorder %s20, 3
      %p140 = por %p138, %p139
      %p142 = scmp.ne.s32.totalorder %s127, %s141
      %p143 = scmp.eq.s32.totalorder %s20, 0
      %p144 = por %p142, %p143
      %s146 = sadd.s32 %s145, 1
      %p149 = scmp.eq.s32.totalorder %s14, 3
      %p150 = scmp.ne.s32.totalorder %s145, %s147
      %p151 = scmp.eq.s32.totalorder %s14, 0
      %p152 = por %p150, %p151
      %p153 = scmp.ne.s32.totalorder %s145, %s147
      %p154 = scmp.eq.s32.totalorder %s19, 3
      %p155 = por %p153, %p154
      %p156 = scmp.ne.s32.totalorder %s147, %s148
      %p157 = scmp.eq.s32.totalorder %s19, 0
      %p158 = por %p156, %p157
      %p159 = scmp.ne.s32.totalorder %s147, %s148
      %p160 = scmp.eq.s32.totalorder %s20, 3
      %p161 = por %p159, %p160
      %p163 = scmp.ne.s32.totalorder %s148, %s162
      %p164 = scmp.eq.s32.totalorder %s20, 0
      %p165 = por %p163, %p164
      %s166 = ssub.s32 %s21, %s33
      %p167 = scmp.eq.s32.totalorder %s166, 0
      %s169 = sadd.s32 %s168, 1
      %s170 = scalar_select %p167, %s168, %s169
      %p173 = pneg %p167
      %p174 = scmp.eq.s32.totalorder %s14, 3
      %p175 = por %p173, %p174
      %p176 = scmp.ne.s32.totalorder %s168, %s171
      %p177 = scmp.eq.s32.totalorder %s14, 0
      %p178 = por %p176, %p177
      %p179 = scmp.ne.s32.totalorder %s168, %s171
      %p180 = scmp.eq.s32.totalorder %s19, 3
      %p181 = por %p179, %p180
      %p182 = scmp.ne.s32.totalorder %s171, %s172
      %p183 = scmp.eq.s32.totalorder %s19, 0
      %p184 = por %p182, %p183
      %p185 = scmp.ne.s32.totalorder %s171, %s172
      %p186 = scmp.eq.s32.totalorder %s20, 3
      %p187 = por %p185, %p186
      %p189 = scmp.ne.s32.totalorder %s172, %s188
      %p190 = scmp.eq.s32.totalorder %s20, 0
      %p191 = por %p189, %p190
      %p192 = scmp.le.s32.totalorder 1, %s14
      %p193 = scmp.lt.s32.totalorder %s14, 5
      %p194 = pnand %p192, %p193
      %p195 = pneg %p194
      // Predicated region
      $region9: #{tpu_custom_call.1} parent=5 // pred_check
        _
      $region10: #{tpu_custom_call.1} parent=5 // pred_check_branch
        %197 = sbr.rel (%p194) target = $region12
      $region11: #{tpu_custom_call.1} parent=5 // pred_region
        %s198 = ssub.s32 %s14, 1
        // Predicated region
        $region13: #{tpu_custom_call.1} parent=11 // pred_check
          %p199 = pneg %p137
        $region14: #{tpu_custom_call.1} parent=11 // pred_check_branch
          %201 = sbr.rel (%p199) target = $region16
        $region15: #{tpu_custom_call.1} parent=11 // pred_region
          _
        $region16: #{tpu_custom_call.1} parent=11 // pred_fallthru
          _
        // Predicated region
        $region17: #{tpu_custom_call.1} parent=11 // pred_check
          %p202 = pneg %p158
        $region18: #{tpu_custom_call.1} parent=11 // pred_check_branch
          %204 = sbr.rel (%p202) target = $region20
        $region19: #{tpu_custom_call.1} parent=11 // pred_region
          _
        $region20: #{tpu_custom_call.1} parent=11 // pred_fallthru
          _
      $region12: #{tpu_custom_call.1} parent=5 // pred_fallthru
        _
      %p205 = scmp.lt.s32.totalorder %s14, 4
      // Predicated region
      $region21: #{tpu_custom_call.1} parent=5 // pred_check
        %p206 = pneg %p205
      $region22: #{tpu_custom_call.1} parent=5 // pred_check_branch
        %208 = sbr.rel (%p206) target = $region24
      $region23: #{tpu_custom_call.1} parent=5 // pred_region
        // Predicated region
        $region25: #{tpu_custom_call.1} parent=23 // pred_check
          %p209 = pneg %p50
        $region26: #{tpu_custom_call.1} parent=23 // pred_check_branch
          %211 = sbr.rel (%p209) target = $region28
        $region27: #{tpu_custom_call.1} parent=23 // pred_region
          %s212 = smul.u32 %s21, 2
          %s213 = sadd.s32 %s212, %s22
          %s214 = smul.u32 2, %s213
          %p215 = scmp.lt.s32.totalorder %s214, 7
          %s216 = scalar_select %p215, %s214, 7
          %s217 = smul.addr %s216, 8
          %s218 = scalar_lea.vmem %s0, %s217
          %s219 = smul.u32 %s21, 2
          %s220 = sadd.s32 %s219, %s22
          %s221 = smul.u32 2, %s220
        $region28: #{tpu_custom_call.1} parent=23 // pred_fallthru
          _
        // Predicated region
        $region29: #{tpu_custom_call.1} parent=23 // pred_check
          %p222 = pneg %p80
        $region30: #{tpu_custom_call.1} parent=23 // pred_check_branch
          %224 = sbr.rel (%p222) target = $region32
        $region31: #{tpu_custom_call.1} parent=23 // pred_region
          %s225 = smul.u32 %s21, 2
          %s226 = sadd.s32 %s225, %s22
          %s227 = smul.u32 2, %s226
          %p228 = scmp.lt.s32.totalorder %s227, 7
          %s229 = scalar_select %p228, %s227, 7
          %s230 = smul.addr %s229, 8
          %s231 = scalar_lea.vmem %s1, %s230
          %s232 = smul.u32 %s21, 2
          %s233 = sadd.s32 %s232, %s22
          %s234 = smul.u32 2, %s233
        $region32: #{tpu_custom_call.1} parent=23 // pred_fallthru
          _
        // Predicated region
        $region33: #{tpu_custom_call.1} parent=23 // pred_check
          %p235 = pneg %p110
        $region34: #{tpu_custom_call.1} parent=23 // pred_check_branch
          %237 = sbr.rel (%p235) target = $region36
        $region35: #{tpu_custom_call.1} parent=23 // pred_region
          %s238 = smul.u32 %s21, 2
          %s239 = sadd.s32 %s238, %s22
          %s240 = smul.u32 16, %s239
          %p241 = scmp.lt.s32.totalorder %s240, 63
          %s242 = scalar_select %p241, %s240, 63
          %s243 = smul.addr %s242, 8
          %s244 = scalar_lea.vmem %s2, %s243
          %s245 = smul.u32 %s21, 2
          %s246 = sadd.s32 %s245, %s22
          %s247 = smul.u32 16, %s246
        $region36: #{tpu_custom_call.1} parent=23 // pred_fallthru
          _
      $region24: #{tpu_custom_call.1} parent=5 // pred_fallthru
        _
      %p248 = scmp.le.s32.totalorder 1, %s14
      %p249 = scmp.lt.s32.totalorder %s14, 5
      %p250 = pnand %p248, %p249
      %p251 = pneg %p250
      // Predicated region
      $region37: #{tpu_custom_call.1} parent=5 // pred_check
        _
      $region38: #{tpu_custom_call.1} parent=5 // pred_check_branch
        %253 = sbr.rel (%p250) target = $region40
      $region39: #{tpu_custom_call.1} parent=5 // pred_region
        %s254 = ssub.s32 %s14, 1
        %s255 = smul.u32 %s23, 2
        %s256 = sadd.s32 %s255, %s24
        %s257 = smul.u32 2, %s256
        %p258 = scmp.lt.s32.totalorder %s257, 7
        %s259 = scalar_select %p258, %s257, 7
        %s260 = smul.addr %s259, 8
        %s261 = scalar_lea.vmem %s0, %s260
        %p262 = pneg %p56
        %p263 = pneg %p53
        %s264 = smul.u32 %s23, 2
        %s265 = sadd.s32 %s264, %s24
        %s266 = smul.u32 2, %s265
        %p267 = scmp.lt.s32.totalorder %s266, 7
        %s268 = scalar_select %p267, %s266, 7
        %s269 = smul.addr %s268, 8
        %s270 = scalar_lea.vmem %s1, %s269
        %p271 = pneg %p86
        %p272 = pneg %p83
        %s273 = smul.u32 %s23, 2
        %s274 = sadd.s32 %s273, %s24
        %s275 = smul.u32 16, %s274
        %p276 = scmp.lt.s32.totalorder %s275, 63
        %s277 = scalar_select %p276, %s275, 63
        %s278 = smul.addr %s277, 8
        %s279 = scalar_lea.vmem %s2, %s278
        %p280 = pneg %p116
        %p281 = pneg %p113
        %p282 = pneg %p137
        %p283 = pneg %p134
        %p284 = pneg %p158
        %p285 = pneg %p155
        %p286 = pneg %p184
        %p287 = pneg %p181
        %s288 = sand.u32 %s171, 1
        %s289 = scalar_lea.sflag [#allocation4], %s288
        %s290 = sand.u32 %s171, 1
        %s291 = smul.addr %s290, 8
        %s292 = scalar_lea.vmem [#allocation3], %s291
        %s293 = smul.u32 %s23, 2
        %s294 = sadd.s32 %s293, %s24
        %s295 = smul.u32 2, %s294
        %p296 = scmp.lt.s32.totalorder %s295, 7
        %s297 = scalar_select %p296, %s295, 7
        %s298 = smul.addr %s297, 8
        %s299 = scalar_lea.vmem %s0, %s298
        %s300 = smul.u32 %s23, 2
        %s301 = sadd.s32 %s300, %s24
        %s302 = smul.u32 2, %s301
        %s303 = smul.u32 %s23, 2
        %s304 = sadd.s32 %s303, %s24
        %s305 = smul.u32 2, %s304
        %p306 = scmp.lt.s32.totalorder %s305, 7
        %s307 = scalar_select %p306, %s305, 7
        %s308 = smul.addr %s307, 8
        %s309 = scalar_lea.vmem %s1, %s308
        %s310 = smul.u32 %s23, 2
        %s311 = sadd.s32 %s310, %s24
        %s312 = smul.u32 2, %s311
        %s313 = smul.u32 %s23, 2
        %s314 = sadd.s32 %s313, %s24
        %s315 = smul.u32 16, %s314
        %p316 = scmp.lt.s32.totalorder %s315, 63
        %s317 = scalar_select %p316, %s315, 63
        %s318 = smul.addr %s317, 8
        %s319 = scalar_lea.vmem %s2, %s318
        %s320 = smul.u32 %s23, 2
        %s321 = sadd.s32 %s320, %s24
        %s322 = smul.u32 16, %s321
        %p323 = scmp.eq.s32.totalorder %s24, 0
        // Predicated region
        $region41: #{tpu_custom_call.1} parent=39 // pred_check
          %p324 = pneg %p323
        $region42: #{tpu_custom_call.1} parent=39 // pred_check_branch
          %326 = sbr.rel (%p324) target = $region44
        $region43: #{tpu_custom_call.1} parent=39 // pred_region
          %vm327 = vcmask 0
          %328 = vst.msk [vmem:[#allocation2] sm:$0x1] %vm327, 0.0
        $region44: #{tpu_custom_call.1} parent=39 // pred_fallthru
          _
        %v329 = vld [vmem:[%s3] sm:$0xff]
        %v330 = vld [vmem:[%s3 + $0x8] sm:$0xff]
        %v331 = vld [vmem:[%s3 + $0x10] sm:$0xff]
        %v332 = vld [vmem:[%s3 + $0x18] sm:$0xff]
        %v333 = vld [vmem:[%s3 + $0x20] sm:$0xff]
        %v334 = vld [vmem:[%s3 + $0x28] sm:$0xff]
        %v335 = vld [vmem:[%s3 + $0x30] sm:$0xff]
        %v336 = vld [vmem:[%s3 + $0x38] sm:$0xff]
        %v337 = vld [vmem:[%s3 + $0x40] sm:$0xff]
        %v338 = vld [vmem:[%s3 + $0x48] sm:$0xff]
        %v339 = vld [vmem:[%s3 + $0x50] sm:$0xff]
        %v340 = vld [vmem:[%s3 + $0x58] sm:$0xff]
        %v341 = vld [vmem:[%s3 + $0x60] sm:$0xff]
        %v342 = vld [vmem:[%s3 + $0x68] sm:$0xff]
        %v343 = vld [vmem:[%s3 + $0x70] sm:$0xff]
        %v344 = vld [vmem:[%s3 + $0x78] sm:$0xff]
        %v345 = vld [vmem:[%s4] sm:$0xff]
        %v346 = vld [vmem:[%s4 + $0x8] sm:$0xff]
        %v347 = vld [vmem:[%s4 + $0x10] sm:$0xff]
        %v348 = vld [vmem:[%s4 + $0x18] sm:$0xff]
        %v349 = vld [vmem:[%s4 + $0x20] sm:$0xff]
        %v350 = vld [vmem:[%s4 + $0x28] sm:$0xff]
        %v351 = vld [vmem:[%s4 + $0x30] sm:$0xff]
        %v352 = vld [vmem:[%s4 + $0x38] sm:$0xff]
        %v353 = vld [vmem:[%s4 + $0x40] sm:$0xff]
        %v354 = vld [vmem:[%s4 + $0x48] sm:$0xff]
        %v355 = vld [vmem:[%s4 + $0x50] sm:$0xff]
        %v356 = vld [vmem:[%s4 + $0x58] sm:$0xff]
        %v357 = vld [vmem:[%s4 + $0x60] sm:$0xff]
        %v358 = vld [vmem:[%s4 + $0x68] sm:$0xff]
        %v359 = vld [vmem:[%s4 + $0x70] sm:$0xff]
        %v360 = vld [vmem:[%s4 + $0x78] sm:$0xff]
        %v361 = vld [vmem:[%s299] sm:$0xff]
        %v362 = vld [vmem:[%s299 + $0x8] sm:$0xff]
        %v363 = vlaneseq
        %v364 = vand.u32 %v363, 127
        %365 = vset.pattern.permute.xlu0 0
        %366 = vperm.xlu0 %365, %v361
        %v367 = vpop.permute.xlu0 %366
        %368 = vset.pattern.permute.xlu0 0
        %369 = vperm.xlu0 %368, %v362
        %v370 = vpop.permute.xlu0 %369
        %vm371 = vcmp.eq.s32.totalorder %v367, %v364
        %vm372 = vcmp.eq.s32.totalorder %v370, %v364
        %v373 = vsel %vm371, 1, 0
        %v374 = vsel %vm372, 1, 0
        %v375 = vcvt.s32.f32 %v373
        %v376 = vcvt.s32.f32 %v374
        %377 = vmatpush.msra.mxu0 %v344
        %378 = vmatpush.msra.mxu0 %v343
        %379 = vmatpush.msra.mxu0 %v342
        %380 = vmatpush.msra.mxu0 %v341
        %381 = vmatpush.msra.mxu0 %v340
        %382 = vmatpush.msra.mxu0 %v339
        %383 = vmatpush.msra.mxu0 %v338
        %384 = vmatpush.msra.mxu0 %v337
        %385 = vmatpush.msra.mxu0 %v336
        %386 = vmatpush.msra.mxu0 %v335
        %387 = vmatpush.msra.mxu0 %v334
        %388 = vmatpush.msra.mxu0 %v333
        %389 = vmatpush.msra.mxu0 %v332
        %390 = vmatpush.msra.mxu0 %v331
        %391 = vmatpush.msra.mxu0 %v330
        %392 = vmatpush.msra.mxu0 %v329
        %393 = vmatmul.f32.gmra.mxu0 %v375
        %v394 = vpop.f32.mrf.mxu0
        %v395 = vadd.f32 0.0, %v394
        %396 = vmatmul.f32.gmra.mxu0 %v376
        %v397 = vpop.f32.mrf.mxu0
        %v398 = vadd.f32 0.0, %v397
        %399 = vdwg.mxu0
        %v400 = vld [vmem:[%s309] sm:$0xff]
        %v401 = vld [vmem:[%s309 + $0x8] sm:$0xff]
        %402 = vset.pattern.permute.xlu0 0
        %403 = vperm.xlu0 %402, %v400
        %v404 = vpop.permute.xlu0 %403
        %405 = vset.pattern.permute.xlu0 0
        %406 = vperm.xlu0 %405, %v401
        %v407 = vpop.permute.xlu0 %406
        %vm408 = vcmp.eq.s32.totalorder %v404, %v364
        %vm409 = vcmp.eq.s32.totalorder %v407, %v364
        %v410 = vsel %vm408, 1, 0
        %v411 = vsel %vm409, 1, 0
        %v412 = vcvt.s32.f32 %v410
        %v413 = vcvt.s32.f32 %v411
        %414 = vmatpush.msra.mxu0 %v360
        %415 = vmatpush.msra.mxu0 %v359
        %416 = vmatpush.msra.mxu0 %v358
        %417 = vmatpush.msra.mxu0 %v357
        %418 = vmatpush.msra.mxu0 %v356
        %419 = vmatpush.msra.mxu0 %v355
        %420 = vmatpush.msra.mxu0 %v354
        %421 = vmatpush.msra.mxu0 %v353
        %422 = vmatpush.msra.mxu0 %v352
        %423 = vmatpush.msra.mxu0 %v351
        %424 = vmatpush.msra.mxu0 %v350
        %425 = vmatpush.msra.mxu0 %v349
        %426 = vmatpush.msra.mxu0 %v348
        %427 = vmatpush.msra.mxu0 %v347
        %428 = vmatpush.msra.mxu0 %v346
        %429 = vmatpush.msra.mxu0 %v345
        %430 = vmatmul.f32.gmra.mxu0 %v412
        %v431 = vpop.f32.mrf.mxu0
        %v432 = vadd.f32 0.0, %v431
        %433 = vmatmul.f32.gmra.mxu0 %v413
        %v434 = vpop.f32.mrf.mxu0
        %v435 = vadd.f32 0.0, %v434
        %436 = vdwg.mxu0
        %v437 = vld [vmem:[%s319] sm:$0xff]
        %v438 = vld [vmem:[%s319 + $0x8] sm:$0xff]
        %v439 = vld [vmem:[%s319 + $0x10] sm:$0xff]
        %v440 = vld [vmem:[%s319 + $0x18] sm:$0xff]
        %v441 = vld [vmem:[%s319 + $0x20] sm:$0xff]
        %v442 = vld [vmem:[%s319 + $0x28] sm:$0xff]
        %v443 = vld [vmem:[%s319 + $0x30] sm:$0xff]
        %v444 = vld [vmem:[%s319 + $0x38] sm:$0xff]
        %v445 = vld [vmem:[%s319 + $0x40] sm:$0xff]
        %v446 = vld [vmem:[%s319 + $0x48] sm:$0xff]
        %v447 = vld [vmem:[%s319 + $0x50] sm:$0xff]
        %v448 = vld [vmem:[%s319 + $0x58] sm:$0xff]
        %v449 = vld [vmem:[%s319 + $0x60] sm:$0xff]
        %v450 = vld [vmem:[%s319 + $0x68] sm:$0xff]
        %v451 = vld [vmem:[%s319 + $0x70] sm:$0xff]
        %v452 = vld [vmem:[%s319 + $0x78] sm:$0xff]
        %453 = vset.pattern.permute.xlu0 0
        %454 = vperm.xlu0 %453, %v437
        %v455 = vpop.permute.xlu0 %454
        %456 = vset.pattern.permute.xlu0 0
        %457 = vperm.xlu0 %456, %v438
        %v458 = vpop.permute.xlu0 %457
        %459 = vset.pattern.permute.xlu0 0
        %460 = vperm.xlu0 %459, %v439
        %v461 = vpop.permute.xlu0 %460
        %462 = vset.pattern.permute.xlu0 0
        %463 = vperm.xlu0 %462, %v440
        %v464 = vpop.permute.xlu0 %463
        %465 = vset.pattern.permute.xlu0 0
        %466 = vperm.xlu0 %465, %v441
        %v467 = vpop.permute.xlu0 %466
        %468 = vset.pattern.permute.xlu0 0
        %469 = vperm.xlu0 %468, %v442
        %v470 = vpop.permute.xlu0 %469
        %471 = vset.pattern.permute.xlu0 0
        %472 = vperm.xlu0 %471, %v443
        %v473 = vpop.permute.xlu0 %472
        %474 = vset.pattern.permute.xlu0 0
        %475 = vperm.xlu0 %474, %v444
        %v476 = vpop.permute.xlu0 %475
        %477 = vset.pattern.permute.xlu0 0
        %478 = vperm.xlu0 %477, %v445
        %v479 = vpop.permute.xlu0 %478
        %480 = vset.pattern.permute.xlu0 0
        %481 = vperm.xlu0 %480, %v446
        %v482 = vpop.permute.xlu0 %481
        %483 = vset.pattern.permute.xlu0 0
        %484 = vperm.xlu0 %483, %v447
        %v485 = vpop.permute.xlu0 %484
        %486 = vset.pattern.permute.xlu0 0
        %487 = vperm.xlu0 %486, %v448
        %v488 = vpop.permute.xlu0 %487
        %489 = vset.pattern.permute.xlu0 0
        %490 = vperm.xlu0 %489, %v449
        %v491 = vpop.permute.xlu0 %490
        %492 = vset.pattern.permute.xlu0 0
        %493 = vperm.xlu0 %492, %v450
        %v494 = vpop.permute.xlu0 %493
        %495 = vset.pattern.permute.xlu0 0
        %496 = vperm.xlu0 %495, %v451
        %v497 = vpop.permute.xlu0 %496
        %498 = vset.pattern.permute.xlu0 0
        %499 = vperm.xlu0 %498, %v452
        %v500 = vpop.permute.xlu0 %499
        %vm501 = vcmp.eq.s32.totalorder %v455, %v364
        %vm502 = vcmp.eq.s32.totalorder %v458, %v364
        %vm503 = vcmp.eq.s32.totalorder %v461, %v364
        %vm504 = vcmp.eq.s32.totalorder %v464, %v364
        %vm505 = vcmp.eq.s32.totalorder %v467, %v364
        %vm506 = vcmp.eq.s32.totalorder %v470, %v364
        %vm507 = vcmp.eq.s32.totalorder %v473, %v364
        %vm508 = vcmp.eq.s32.totalorder %v476, %v364
        %vm509 = vcmp.eq.s32.totalorder %v479, %v364
        %vm510 = vcmp.eq.s32.totalorder %v482, %v364
        %vm511 = vcmp.eq.s32.totalorder %v485, %v364
        %vm512 = vcmp.eq.s32.totalorder %v488, %v364
        %vm513 = vcmp.eq.s32.totalorder %v491, %v364
        %vm514 = vcmp.eq.s32.totalorder %v494, %v364
        %vm515 = vcmp.eq.s32.totalorder %v497, %v364
        %vm516 = vcmp.eq.s32.totalorder %v500, %v364
        %v517 = vsel %vm501, 1, 0
        %v518 = vsel %vm502, 1, 0
        %v519 = vsel %vm503, 1, 0
        %v520 = vsel %vm504, 1, 0
        %v521 = vsel %vm505, 1, 0
        %v522 = vsel %vm506, 1, 0
        %v523 = vsel %vm507, 1, 0
        %v524 = vsel %vm508, 1, 0
        %v525 = vsel %vm509, 1, 0
        %v526 = vsel %vm510, 1, 0
        %v527 = vsel %vm511, 1, 0
        %v528 = vsel %vm512, 1, 0
        %v529 = vsel %vm513, 1, 0
        %v530 = vsel %vm514, 1, 0
        %v531 = vsel %vm515, 1, 0
        %v532 = vsel %vm516, 1, 0
        %v533 = vcvt.s32.f32 %v517
        %v534 = vcvt.s32.f32 %v518
        %v535 = vcvt.s32.f32 %v519
        %v536 = vcvt.s32.f32 %v520
        %v537 = vcvt.s32.f32 %v521
        %v538 = vcvt.s32.f32 %v522
        %v539 = vcvt.s32.f32 %v523
        %v540 = vcvt.s32.f32 %v524
        %v541 = vcvt.s32.f32 %v525
        %v542 = vcvt.s32.f32 %v526
        %v543 = vcvt.s32.f32 %v527
        %v544 = vcvt.s32.f32 %v528
        %v545 = vcvt.s32.f32 %v529
        %v546 = vcvt.s32.f32 %v530
        %v547 = vcvt.s32.f32 %v531
        %v548 = vcvt.s32.f32 %v532
        %549 = vmatpush.msra.mxu0 %v360
        %550 = vmatpush.msra.mxu0 %v359
        %551 = vmatpush.msra.mxu0 %v358
        %552 = vmatpush.msra.mxu0 %v357
        %553 = vmatpush.msra.mxu0 %v356
        %554 = vmatpush.msra.mxu0 %v355
        %555 = vmatpush.msra.mxu0 %v354
        %556 = vmatpush.msra.mxu0 %v353
        %557 = vmatpush.msra.mxu0 %v352
        %558 = vmatpush.msra.mxu0 %v351
        %559 = vmatpush.msra.mxu0 %v350
        %560 = vmatpush.msra.mxu0 %v349
        %561 = vmatpush.msra.mxu0 %v348
        %562 = vmatpush.msra.mxu0 %v347
        %563 = vmatpush.msra.mxu0 %v346
        %564 = vmatpush.msra.mxu0 %v345
        %565 = vmatmul.f32.gmra.mxu0 %v533
        %v566 = vpop.f32.mrf.mxu0
        %v567 = vadd.f32 0.0, %v566
        %568 = vmatmul.f32.gmra.mxu0 %v534
        %v569 = vpop.f32.mrf.mxu0
        %v570 = vadd.f32 0.0, %v569
        %571 = vmatmul.f32.gmra.mxu0 %v535
        %v572 = vpop.f32.mrf.mxu0
        %v573 = vadd.f32 0.0, %v572
        %574 = vmatmul.f32.gmra.mxu0 %v536
        %v575 = vpop.f32.mrf.mxu0
        %v576 = vadd.f32 0.0, %v575
        %577 = vmatmul.f32.gmra.mxu0 %v537
        %v578 = vpop.f32.mrf.mxu0
        %v579 = vadd.f32 0.0, %v578
        %580 = vmatmul.f32.gmra.mxu0 %v538
        %v581 = vpop.f32.mrf.mxu0
        %v582 = vadd.f32 0.0, %v581
        %583 = vmatmul.f32.gmra.mxu0 %v539
        %v584 = vpop.f32.mrf.mxu0
        %v585 = vadd.f32 0.0, %v584
        %586 = vmatmul.f32.gmra.mxu0 %v540
        %v587 = vpop.f32.mrf.mxu0
        %v588 = vadd.f32 0.0, %v587
        %589 = vmatmul.f32.gmra.mxu0 %v541
        %v590 = vpop.f32.mrf.mxu0
        %v591 = vadd.f32 0.0, %v590
        %592 = vmatmul.f32.gmra.mxu0 %v542
        %v593 = vpop.f32.mrf.mxu0
        %v594 = vadd.f32 0.0, %v593
        %595 = vmatmul.f32.gmra.mxu0 %v543
        %v596 = vpop.f32.mrf.mxu0
        %v597 = vadd.f32 0.0, %v596
        %598 = vmatmul.f32.gmra.mxu0 %v544
        %v599 = vpop.f32.mrf.mxu0
        %v600 = vadd.f32 0.0, %v599
        %601 = vmatmul.f32.gmra.mxu0 %v545
        %v602 = vpop.f32.mrf.mxu0
        %v603 = vadd.f32 0.0, %v602
        %604 = vmatmul.f32.gmra.mxu0 %v546
        %v605 = vpop.f32.mrf.mxu0
        %v606 = vadd.f32 0.0, %v605
        %607 = vmatmul.f32.gmra.mxu0 %v547
        %v608 = vpop.f32.mrf.mxu0
        %v609 = vadd.f32 0.0, %v608
        %610 = vmatmul.f32.gmra.mxu0 %v548
        %v611 = vpop.f32.mrf.mxu0
        %v612 = vadd.f32 0.0, %v611
        %613 = vdwg.mxu0
        %v614 = vmul.f32 %v432, %v395
        %v615 = vmul.f32 %v435, %v398
        %vm616 = vcmask 261120
        %v617 = vsel %vm616, %v614, 0.0
        %618 = vadd.xlane.f32.xlu0 %v617
        %v619 = vpop.xlane.xlu0 %618
        %v620 = vsel %vm616, %v615, 0.0
        %621 = vadd.xlane.f32.xlu0 %v620
        %v622 = vpop.xlane.xlu0 %621
        %v624 = vsel %vm616, %v395, 0
        %v627 = vsel %vm616, %v398, 0
        %v630 = vsel %vm616, %v567, 0
        %v633 = vsel %vm616, %v570, 0
        %v636 = vsel %vm616, %v573, 0
        %v639 = vsel %vm616, %v576, 0
        %v642 = vsel %vm616, %v579, 0
        %v645 = vsel %vm616, %v582, 0
        %v648 = vsel %vm616, %v585, 0
        %v651 = vsel %vm616, %v588, 0
        %v654 = vsel %vm616, %v591, 0
        %v657 = vsel %vm616, %v594, 0
        %v660 = vsel %vm616, %v597, 0
        %v663 = vsel %vm616, %v600, 0
        %v666 = vsel %vm616, %v603, 0
        %v669 = vsel %vm616, %v606, 0
        %v672 = vsel %vm616, %v609, 0
        %v675 = vsel %vm616, %v612, 0
        %677 = vmatpush.xpose.msra.mxu0 %v675
        %678 = vmatpush.xpose.msra.mxu0 %v672
        %679 = vmatpush.xpose.msra.mxu0 %v669
        %680 = vmatpush.xpose.msra.mxu0 %v666
        %681 = vmatpush.xpose.msra.mxu0 %v663
        %682 = vmatpush.xpose.msra.mxu0 %v660
        %683 = vmatpush.xpose.msra.mxu0 %v657
        %684 = vmatpush.xpose.msra.mxu0 %v654
        %685 = vmatpush.xpose.msra.mxu0 %v651
        %686 = vmatpush.xpose.msra.mxu0 %v648
        %687 = vmatpush.xpose.msra.mxu0 %v645
        %688 = vmatpush.xpose.msra.mxu0 %v642
        %689 = vmatpush.xpose.msra.mxu0 %v639
        %690 = vmatpush.xpose.msra.mxu0 %v636
        %691 = vmatpush.xpose.msra.mxu0 %v633
        %692 = vmatpush.xpose.msra.mxu0 %v630
        %693 = vmatmul.f32.gmra.mxu0 %v624
        %v694 = vpop.f32.mrf.mxu0
        %v695 = vadd.f32 0.0, %v694
        %696 = vmatmul.f32.gmra.mxu0 %v627
        %v697 = vpop.f32.mrf.mxu0
        %v698 = vadd.f32 0.0, %v697
        %699 = vdwg.mxu0
        %v700 = vlaneseq
        %v701 = vshrl.u32 %v700, 7
        %v702 = vadd.s32 %v701, 8
        %v703 = vmul.u32 %v701, 8
        %v704 = vmul.u32 %v702, 8
        %vm705 = vcmp.ge.s32.totalorder %v364, %v703
        %vm706 = vcmp.ge.s32.totalorder %v364, %v704
        %v707 = vadd.s32 %v701, 1
        %v708 = vadd.s32 %v702, 1
        %v709 = vmul.u32 %v707, 8
        %v710 = vmul.u32 %v708, 8
        %vm711 = vcmp.lt.s32.totalorder %v364, %v709
        %vm712 = vcmp.lt.s32.totalorder %v364, %v710
        %vm713 = vmand %vm705, %vm711
        %vm714 = vmand %vm706, %vm712
        %v715 = vsel %vm713, %v695, -inf
        %v716 = vsel %vm714, %v698, -inf
        %717 = vmax.xlane.f32.xlu0 %v715
        %v718 = vpop.xlane.xlu0 %717
        %719 = vmax.xlane.f32.xlu0 %v716
        %v720 = vpop.xlane.xlu0 %719
        %v721 = vsub.f32 %v715, %v718
        %v722 = vsub.f32 %v716, %v720
        %v723 = vmul.f32 %v721, 1.442695
        %v724 = vpow.pop %v723
        %v725 = vmul.f32 %v722, 1.442695
        %v726 = vpow.pop %v725
        %727 = vadd.xlane.f32.xlu0 %v724
        %v728 = vpop.xlane.xlu0 %727
        %729 = vadd.xlane.f32.xlu0 %v726
        %v730 = vpop.xlane.xlu0 %729
        %v731 = vlog2.pop %v728
        %v732 = vmul.f32 %v731, 0.6931472
        %v733 = vlog2.pop %v730
        %v734 = vmul.f32 %v733, 0.6931472
        %v735 = vadd.f32 %v718, %v732
        %v736 = vadd.f32 %v720, %v734
        %v737 = vld [vmem:[#allocation2] sm:$0x1]
        %v738 = vsub.f32 %v735, %v619
        %v739 = vsub.f32 %v736, %v622
        %vm740 = vcmask 7168
        %v741 = vsel %vm740, %v738, 0.0
        %v742 = vsel %vm740, %v739, 0.0
        %v743 = vadd.f32 %v741, %v742
        %744 = vadd.xlane.f32.xlu0 %v743
        %v745 = vpop.xlane.xlu0 %744
        %v746 = vrot.slane %v745, 4
        %v747 = vadd.f32 %v745, %v746
        %v748 = vrot.slane %v747, 2
        %v749 = vadd.f32 %v747, %v748
        %v750 = vrot.slane %v749, 1
        %v751 = vadd.f32 %v749, %v750
        %s752 = vtos %v751
        %v753 = vstv %s752
        %v754 = vadd.f32 %v737, %v753
        %vm755 = vcmask 0
        %756 = vst.msk [vmem:[#allocation2] sm:$0x1] %vm755, %v754
        %p757 = scmp.eq.s32.totalorder %s24, 1
        // Predicated region
        $region45: #{tpu_custom_call.1} parent=39 // pred_check
          %p758 = pneg %p757
        $region46: #{tpu_custom_call.1} parent=39 // pred_check_branch
          %760 = sbr.rel (%p758) target = $region48
        $region47: #{tpu_custom_call.1} parent=39 // pred_region
          %v761 = vld [vmem:[#allocation2] sm:$0x1]
          %v763 = vperm.slane %v761, 0
          %764 = vset.pattern.permute.xlu0 0
          %765 = vperm.xlu0 %764, %v763
          %v766 = vpop.permute.xlu0 %765
          %768 = vst [vmem:[%s292] sm:$0xff] %v766
        $region48: #{tpu_custom_call.1} parent=39 // pred_fallthru
          _
        %s769 = sand.u32 %s171, 1
        %s770 = scalar_lea.sflag [#allocation4], %s769
        %s771 = sand.u32 %s171, 1
        %s772 = smul.addr %s771, 8
        %s773 = scalar_lea.vmem [#allocation3], %s772
        // Predicated region
        $region49: #{tpu_custom_call.1} parent=39 // pred_check
          %p774 = pneg %p181
        $region50: #{tpu_custom_call.1} parent=39 // pred_check_branch
          %776 = sbr.rel (%p774) target = $region52
        $region51: #{tpu_custom_call.1} parent=39 // pred_region
          %778 = vsyncadd %s770, 0
          %s779 = smul.addr %s23, 8
          %s780 = scalar_lea.hbm %s5, %s779
          %s782 = sshll.u32 %s773, 4
          %s783 = int_to_ptr.vmem [resolvable:$true] %s782
          %s784 = sshll.u32 %s780, 4
          %s785 = int_to_ptr.hbm [resolvable:$true] %s784
          %787 = dma.vmem_to_hbm [thread:$0]  %s783, 128, %s785, %s770
        $region52: #{tpu_custom_call.1} parent=39 // pred_fallthru
          _
      $region40: #{tpu_custom_call.1} parent=5 // pred_fallthru
        _
      %p788 = scmp.le.s32.totalorder 2, %s14
      // Predicated region
      $region53: #{tpu_custom_call.1} parent=5 // pred_check
        %p789 = pneg %p788
      $region54: #{tpu_custom_call.1} parent=5 // pred_check_branch
        %791 = sbr.rel (%p789) target = $region56
      $region55: #{tpu_custom_call.1} parent=5 // pred_region
        %s792 = ssub.s32 %s14, 2
        // Predicated region
        $region57: #{tpu_custom_call.1} parent=55 // pred_check
          %p793 = pneg %p187
        $region58: #{tpu_custom_call.1} parent=55 // pred_check_branch
          %795 = sbr.rel (%p793) target = $region60
        $region59: #{tpu_custom_call.1} parent=55 // pred_region
          %s796 = sand.u32 %s172, 1
          %s797 = scalar_lea.sflag [#allocation4], %s796
          %s798 = sand.u32 %s172, 1
          %s799 = smul.addr %s798, 8
          %s800 = scalar_lea.vmem [#allocation3], %s799
          %802 = dma.done %s797, 128
        $region60: #{tpu_custom_call.1} parent=55 // pred_fallthru
          _
      $region56: #{tpu_custom_call.1} parent=5 // pred_fallthru
        _
    $region6: #{tpu_custom_call.1} parent=1 // loop_footer
      %s18 = sadd.s32 1, %s14
    $region7: #{tpu_custom_call.1} parent=1 // loop_footer_branch
      %13 = sbr.rel target = $region3
    $region8: #{tpu_custom_call.1} parent=1 // loop_exit
      _
    %803 = vsyncpa [#allocation4], 1
    %s804 = scalar_lea.sflag [#allocation4], 1
    %805 = vsyncpa %s804, 1

</llo_original>
